<compile_context>
chip_gen: v5e
topology: v5e:2x2
jax: 0.10.0
libtpu: 0.0.40
codegen_flags: <defaults>
</compile_context>

<pallas_src>
import functools
import math

import jax
import jax.numpy as jnp
from jax import lax
from jax.experimental import pallas as pl
from jax.experimental.pallas import tpu as pltpu


def _round_up(x, m):
    return ((x + m - 1) // m) * m


def _lane_tile(x, reps):
    """Replicate a lane-dense (rows, 128) array to (rows, 128*reps)."""
    if reps == 1:
        return x
    return jnp.concatenate([x] * reps, axis=-1)


def _flash_self_attn_kernel(q_ref, kv_ref, o_ref, q_scr, m_scr, l_scr, acc_scr, *,
                            scale, seq_len, needs_mask, block_k):
    # q_ref: (blk_q, Dp)  kv_ref: (blk_k, Dp)  o_ref: (blk_q, Dp)
    # q_scr: (blk_q, Dp) input dtype; m/l: (blk_q, 128) f32 lane-replicated;
    # acc_scr: (blk_q, Dp) f32.
    ki = pl.program_id(2)
    lanes = m_scr.shape[-1]          # 128
    dp = acc_scr.shape[-1]

    @pl.when(ki == 0)
    def _():
        # q is resident across the whole ki reduction: fold 1/sqrt(d) into it
        # exactly once per (b, qi) block (hoisted out of the ki loop).
        q_scr[...] = q_ref[...] * jnp.asarray(scale, dtype=q_ref.dtype)
        m_scr[...] = jnp.full_like(m_scr, -jnp.inf)
        l_scr[...] = jnp.zeros_like(l_scr)
        acc_scr[...] = jnp.zeros_like(acc_scr)

    q = q_scr[...]
    kv = kv_ref[...]

    # scores = q @ k^T via a last-dim contraction (no explicit transpose),
    # accumulated in f32 on the MXU.
    s = lax.dot_general(q, kv, (((1,), (1,)), ((), ())),
                        preferred_element_type=jnp.float32)  # (blk_q, blk_k)
    blk_k = s.shape[-1]

    if needs_mask:
        # Additive bias on a tiny (1, blk_k) strip + one broadcast add over the
        # scores (padded key columns -> -1e30). The first k-tile always holds a
        # valid column, so m_new is finite before any fully-masked tile.
        col = ki * block_k + lax.broadcasted_iota(jnp.int32, (1, blk_k), 1)
        bias = jnp.where(col < seq_len, 0.0, -1e30).astype(jnp.float32)
        s = s + bias

    # Online softmax update with lane-replicated running stats.
    m_prev = m_scr[...]                               # (blk_q, 128)
    m_curr = jnp.max(s, axis=-1, keepdims=True)       # (blk_q, 1)
    m_next = jnp.maximum(m_prev, m_curr)              # (blk_q, 128)
    alpha = jnp.exp(m_prev - m_next)                  # (blk_q, 128)

    p = jnp.exp(s - _lane_tile(m_next, blk_k // lanes))        # (blk_q, blk_k)
    l_curr = jnp.sum(p, axis=-1, keepdims=True)                # (blk_q, 1)

    l_scr[...] = alpha * l_scr[...] + l_curr
    acc_scr[...] = acc_scr[...] * _lane_tile(alpha, dp // lanes) + jnp.dot(
        p.astype(kv.dtype), kv, preferred_element_type=jnp.float32)
    m_scr[...] = m_next

    @pl.when(ki == pl.num_programs(2) - 1)
    def _():
        l = l_scr[...]
        inv_l = pl.reciprocal(l, approx=True)       # EUP slot (cheap)
        inv_l = inv_l * (2.0 - l * inv_l)           # one Newton step -> ~f32 exact
        o_ref[...] = (acc_scr[...] * _lane_tile(inv_l, dp // lanes)).astype(o_ref.dtype)


def self_attention(x, *, block_q=512, block_k=512, matmul_in_bf16=False):
    """x: (B, S, D). Returns (B, S, D), matching the PyTorch module's forward."""
    B, S, D = x.shape

    # Lane-dense feature dim; 128-aligned sequence tiles (clamped to S).
    Dp = _round_up(D, 128)
    s128 = _round_up(S, 128)

    def _pick(requested):
        b = min(requested, s128)
        return max(128, (b // 128) * 128)

    blk_q = _pick(block_q)
    blk_k = _pick(block_k)

    # v7x has 2 TensorCores; keep at least 2 "parallel" grid points when that
    # can be done while staying a clean multiple of 128.
    while (B * pl.cdiv(s128, blk_q) < 2 and blk_q > 128
           and (blk_q // 2) % 128 == 0):
        blk_q //= 2

    S_pad = _round_up(S, math.lcm(blk_q, blk_k))

    x_p = x
    if S_pad != S or Dp != D:
        x_p = jnp.pad(x_p, ((0, 0), (0, S_pad - S), (0, Dp - D)))
    if matmul_in_bf16 and x_p.dtype == jnp.float32:
        # Halves kv HBM traffic and uses the bf16-native MXU (f32 accumulation
        # and f32 output are kept). Biggest win on v5e; opt-in for numerics.
        x_p = x_p.astype(jnp.bfloat16)

    needs_mask = S_pad != S
    kernel = functools.partial(
        _flash_self_attn_kernel,
        scale=1.0 / math.sqrt(D),       # d of the *original* feature dim
        seq_len=S,
        needs_mask=needs_mask,
        block_k=blk_k,
    )

    out_p = pl.pallas_call(
        kernel,
        out_shape=jax.ShapeDtypeStruct((B, S_pad, Dp), x.dtype),
        grid_spec=pltpu.PrefetchScalarGridSpec(
            num_scalar_prefetch=0,
            grid=(B, S_pad // blk_q, S_pad // blk_k),
            in_specs=[
                pl.BlockSpec((None, blk_q, Dp), lambda b, qi, ki: (b, qi, 0)),
                # kv streams along ki; if profiling shows exposed kv DMA, add
                # pipeline_mode=pl.Buffered(3) here.
                pl.BlockSpec((None, blk_k, Dp), lambda b, qi, ki: (b, ki, 0)),
            ],
            out_specs=pl.BlockSpec((None, blk_q, Dp),
                                   lambda b, qi, ki: (b, qi, 0)),
            scratch_shapes=[
                pltpu.VMEM((blk_q, Dp), x_p.dtype),     # pre-scaled q (hoisted)
                pltpu.VMEM((blk_q, 128), jnp.float32),  # running max m (lane-replicated)
                pltpu.VMEM((blk_q, 128), jnp.float32),  # running denom l (lane-replicated)
                pltpu.VMEM((blk_q, Dp), jnp.float32),   # f32 output accumulator
            ],
        ),
        compiler_params=pltpu.CompilerParams(
            dimension_semantics=("parallel", "parallel", "arbitrary")),
    )(x_p, x_p)

    if S_pad != S or Dp != D:
        return out_p[:, :S, :D]
    return out_p


def _reference_self_attention(x):
    d = x.shape[-1]
    scores = jnp.einsum("bqd,bkd->bqk", x, x, precision="highest") / math.sqrt(d)
    attn = jax.nn.softmax(scores, axis=2)
    return jnp.einsum("bqk,bkd->bqd", attn, x, precision="highest")


if __name__ == "__main__":
    key = jax.random.PRNGKey(0)

    # Small shape implied by the module (batch, seq, hidden).
    B, S, D = 2, 8, 32
    x = jax.random.normal(key, (B, S, D), dtype=jnp.float32)
    out = jax.block_until_ready(self_attention(x))
    ref = _reference_self_attention(x)
    assert out.shape == (B, S, D)
    assert jnp.allclose(out, ref, atol=1e-4, rtol=1e-4), "mismatch vs reference (small)"

    # Multi-tile online-softmax path (no padding, 2 k-tiles per q-tile).
    B2, S2, D2 = 2, 256, 128
    x2 = jax.random.normal(jax.random.PRNGKey(1), (B2, S2, D2), dtype=jnp.float32)
    out2 = jax.block_until_ready(self_attention(x2, block_q=128, block_k=128))
    ref2 = _reference_self_attention(x2)
    assert out2.shape == (B2, S2, D2)
    assert jnp.allclose(out2, ref2, atol=1e-4, rtol=1e-4), "mismatch vs reference (tiled)"

    # bf16-operand fast path (f32 accumulation); loose tolerance for bf16 inputs.
    out3 = jax.block_until_ready(
        self_attention(x2, block_q=128, block_k=128, matmul_in_bf16=True))
    assert out3.shape == (B2, S2, D2)
    assert float(jnp.max(jnp.abs(out3 - ref2))) < 0.1, "mismatch vs reference (bf16)"

    print("KERNEL_OK")
</pallas_src>

<mosaic_0001>
module attributes {stable_mosaic.version = 11 : i64} {
  func.func @_flash_self_attn_kernel(%arg0: i32, %arg1: i32, %arg2: i32, %arg3: memref<1x128x128xf32, #tpu.memory_space<vmem>>, %arg4: memref<1x128x128xf32, #tpu.memory_space<vmem>>, %arg5: memref<1x128x128xf32, #tpu.memory_space<vmem>>, %arg6: memref<128x128xf32, #tpu.memory_space<vmem>>, %arg7: memref<128x128xf32, #tpu.memory_space<vmem>>, %arg8: memref<128x128xf32, #tpu.memory_space<vmem>>, %arg9: memref<128x128xf32, #tpu.memory_space<vmem>>) attributes {dimension_semantics = [#tpu.dimension_semantics<parallel>, #tpu.dimension_semantics<parallel>, #tpu.dimension_semantics<arbitrary>], iteration_bounds = array<i64: 2, 1, 1>, scalar_prefetch = 0 : i64, scratch_operands = 4 : i64, tpu.core_type = #tpu.core_type<tc>, window_params = [{transform_indices = @transform_0, window_bounds = array<i64: 1, 128, 128>}, {transform_indices = @transform_1, window_bounds = array<i64: 1, 128, 128>}, {transform_indices = @transform_2, window_bounds = array<i64: 1, 128, 128>}]} {
    %c0_i32 = arith.constant 0 : i32
    %0 = arith.cmpi eq, %arg2, %c0_i32 : i32
    %1 = arith.extui %0 : i1 to i32
    %c0_i32_0 = arith.constant 0 : i32
    %2 = arith.cmpi ne, %1, %c0_i32_0 : i32
    scf.if %2 {
      %c0_24 = arith.constant 0 : index
      %c0_25 = arith.constant 0 : index
      %c0_26 = arith.constant 0 : index
      %43 = vector.load %arg3[%c0_24, %c0_25, %c0_26] : memref<1x128x128xf32, #tpu.memory_space<vmem>>, vector<1x128x128xf32>
      %44 = vector.shape_cast %43 : vector<1x128x128xf32> to vector<128x128xf32>
      %cst_27 = arith.constant 0.176776692 : f32
      %45 = vector.broadcast %cst_27 : f32 to vector<128x128xf32>
      %46 = arith.mulf %44, %45 : vector<128x128xf32>
      %c0_28 = arith.constant 0 : index
      %c0_29 = arith.constant 0 : index
      %47 = vector.load %arg6[%c0_28, %c0_29] : memref<128x128xf32, #tpu.memory_space<vmem>>, vector<128x128xf32>
      tpu.vector_store %arg6[%c0_28, %c0_29], %46 {strides = array<i32>} : memref<128x128xf32, #tpu.memory_space<vmem>>, vector<128x128xf32>,
      %cst_30 = arith.constant 0xFF800000 : f32
      %48 = vector.broadcast %cst_30 : f32 to vector<128x128xf32>
      %c0_31 = arith.constant 0 : index
      %c0_32 = arith.constant 0 : index
      %49 = vector.load %arg7[%c0_31, %c0_32] : memref<128x128xf32, #tpu.memory_space<vmem>>, vector<128x128xf32>
      tpu.vector_store %arg7[%c0_31, %c0_32], %48 {strides = array<i32>} : memref<128x128xf32, #tpu.memory_space<vmem>>, vector<128x128xf32>,
      %cst_33 = arith.constant 0.000000e+00 : f32
      %50 = vector.broadcast %cst_33 : f32 to vector<128x128xf32>
      %c0_34 = arith.constant 0 : index
      %c0_35 = arith.constant 0 : index
      %51 = vector.load %arg8[%c0_34, %c0_35] : memref<128x128xf32, #tpu.memory_space<vmem>>, vector<128x128xf32>
      tpu.vector_store %arg8[%c0_34, %c0_35], %50 {strides = array<i32>} : memref<128x128xf32, #tpu.memory_space<vmem>>, vector<128x128xf32>,
      %cst_36 = arith.constant 0.000000e+00 : f32
      %52 = vector.broadcast %cst_36 : f32 to vector<128x128xf32>
      %c0_37 = arith.constant 0 : index
      %c0_38 = arith.constant 0 : index
      %53 = vector.load %arg9[%c0_37, %c0_38] : memref<128x128xf32, #tpu.memory_space<vmem>>, vector<128x128xf32>
      tpu.vector_store %arg9[%c0_37, %c0_38], %52 {strides = array<i32>} : memref<128x128xf32, #tpu.memory_space<vmem>>, vector<128x128xf32>,
    } else {
    }
    %c0 = arith.constant 0 : index
    %c0_1 = arith.constant 0 : index
    %3 = vector.load %arg6[%c0, %c0_1] : memref<128x128xf32, #tpu.memory_space<vmem>>, vector<128x128xf32>
    %c0_2 = arith.constant 0 : index
    %c0_3 = arith.constant 0 : index
    %c0_4 = arith.constant 0 : index
    %4 = vector.load %arg4[%c0_2, %c0_3, %c0_4] : memref<1x128x128xf32, #tpu.memory_space<vmem>>, vector<1x128x128xf32>
    %5 = vector.shape_cast %4 : vector<1x128x128xf32> to vector<128x128xf32>
    %cst = arith.constant dense<0.000000e+00> : vector<128x128xf32>
    %6 = tpu.matmul %3, %5, %cst {dimension_numbers = #tpu.dot_dimension_numbers<[1], [1], [0], [0], [0, 0, 1, 0], [], []>} : vector<128x128xf32>, vector<128x128xf32>, vector<128x128xf32> -> vector<128x128xf32>
    %c128_i32 = arith.constant 128 : i32
    %7 = arith.muli %arg2, %c128_i32 : i32
    %8 = tpu.iota {dimensions = array<i32: 1>} : vector<1x128xi32>
    %9 = vector.broadcast %7 : i32 to vector<1x128xi32>
    %10 = arith.addi %9, %8 : vector<1x128xi32>
    %c8_i32 = arith.constant 8 : i32
    %11 = vector.broadcast %c8_i32 : i32 to vector<1x128xi32>
    %12 = arith.cmpi slt, %10, %11 : vector<1x128xi32>
    %cst_5 = arith.constant 0.000000e+00 : f32
    %cst_6 = arith.constant -1.000000e+30 : f32
    %13 = vector.broadcast %cst_5 : f32 to vector<1x128xf32>
    %14 = vector.broadcast %cst_6 : f32 to vector<1x128xf32>
    %15 = arith.select %12, %13, %14 : vector<1x128xi1>, vector<1x128xf32>
    %16 = vector.broadcast %15 : vector<1x128xf32> to vector<128x128xf32>
    %17 = arith.addf %6, %16 : vector<128x128xf32>
    %c0_7 = arith.constant 0 : index
    %c0_8 = arith.constant 0 : index
    %18 = vector.load %arg7[%c0_7, %c0_8] : memref<128x128xf32, #tpu.memory_space<vmem>>, vector<128x128xf32>
    %cst_9 = arith.constant dense<0xFF800000> : vector<128xf32>
    %19 = vector.multi_reduction <maximumf>, %17, %cst_9 [1] : vector<128x128xf32> to vector<128xf32>
    %20 = vector.shape_cast %19 : vector<128xf32> to vector<128x1xf32>
    %21 = vector.broadcast %20 : vector<128x1xf32> to vector<128x128xf32>
    %22 = arith.maximumf %18, %21 : vector<128x128xf32>
    %23 = arith.subf %18, %22 : vector<128x128xf32>
    %24 = math.exp %23 : vector<128x128xf32>
    %25 = arith.subf %17, %22 : vector<128x128xf32>
    %26 = math.exp %25 : vector<128x128xf32>
    %cst_10 = arith.constant dense<0.000000e+00> : vector<128xf32>
    %27 = vector.multi_reduction <add>, %26, %cst_10 [1] : vector<128x128xf32> to vector<128xf32>
    %28 = vector.shape_cast %27 : vector<128xf32> to vector<128x1xf32>
    %c0_11 = arith.constant 0 : index
    %c0_12 = arith.constant 0 : index
    %29 = vector.load %arg8[%c0_11, %c0_12] : memref<128x128xf32, #tpu.memory_space<vmem>>, vector<128x128xf32>
    %30 = arith.mulf %24, %29 : vector<128x128xf32>
    %31 = vector.broadcast %28 : vector<128x1xf32> to vector<128x128xf32>
    %32 = arith.addf %30, %31 : vector<128x128xf32>
    %c0_13 = arith.constant 0 : index
    %c0_14 = arith.constant 0 : index
    %33 = vector.load %arg8[%c0_13, %c0_14] : memref<128x128xf32, #tpu.memory_space<vmem>>, vector<128x128xf32>
    tpu.vector_store %arg8[%c0_13, %c0_14], %32 {strides = array<i32>} : memref<128x128xf32, #tpu.memory_space<vmem>>, vector<128x128xf32>,
    %c0_15 = arith.constant 0 : index
    %c0_16 = arith.constant 0 : index
    %34 = vector.load %arg9[%c0_15, %c0_16] : memref<128x128xf32, #tpu.memory_space<vmem>>, vector<128x128xf32>
    %35 = arith.mulf %34, %24 : vector<128x128xf32>
    %cst_17 = arith.constant dense<0.000000e+00> : vector<128x128xf32>
    %36 = tpu.matmul %26, %5, %cst_17 {dimension_numbers = #tpu.dot_dimension_numbers<[1], [0], [0], [1], [0, 0, 1, 1], [], []>} : vector<128x128xf32>, vector<128x128xf32>, vector<128x128xf32> -> vector<128x128xf32>
    %37 = arith.addf %35, %36 : vector<128x128xf32>
    %c0_18 = arith.constant 0 : index
    %c0_19 = arith.constant 0 : index
    %38 = vector.load %arg9[%c0_18, %c0_19] : memref<128x128xf32, #tpu.memory_space<vmem>>, vector<128x128xf32>
    tpu.vector_store %arg9[%c0_18, %c0_19], %37 {strides = array<i32>} : memref<128x128xf32, #tpu.memory_space<vmem>>, vector<128x128xf32>,
    %c0_20 = arith.constant 0 : index
    %c0_21 = arith.constant 0 : index
    %39 = vector.load %arg7[%c0_20, %c0_21] : memref<128x128xf32, #tpu.memory_space<vmem>>, vector<128x128xf32>
    tpu.vector_store %arg7[%c0_20, %c0_21], %22 {strides = array<i32>} : memref<128x128xf32, #tpu.memory_space<vmem>>, vector<128x128xf32>,
    %c0_i32_22 = arith.constant 0 : i32
    %40 = arith.cmpi eq, %arg2, %c0_i32_22 : i32
    %41 = arith.extui %40 : i1 to i32
    %c0_i32_23 = arith.constant 0 : i32
    %42 = arith.cmpi ne, %41, %c0_i32_23 : i32
    scf.if %42 {
      %c0_24 = arith.constant 0 : index
      %c0_25 = arith.constant 0 : index
      %43 = vector.load %arg8[%c0_24, %c0_25] : memref<128x128xf32, #tpu.memory_space<vmem>>, vector<128x128xf32>
      %44 = tpu.reciprocal %43 {approx = true} : vector<128x128xf32> -> vector<128x128xf32>
      %45 = arith.mulf %43, %44 : vector<128x128xf32>
      %cst_26 = arith.constant 2.000000e+00 : f32
      %46 = vector.broadcast %cst_26 : f32 to vector<128x128xf32>
      %47 = arith.subf %46, %45 : vector<128x128xf32>
      %48 = arith.mulf %44, %47 : vector<128x128xf32>
      %c0_27 = arith.constant 0 : index
      %c0_28 = arith.constant 0 : index
      %49 = vector.load %arg9[%c0_27, %c0_28] : memref<128x128xf32, #tpu.memory_space<vmem>>, vector<128x128xf32>
      %50 = arith.mulf %49, %48 : vector<128x128xf32>
      %c0_29 = arith.constant 0 : index
      %c0_30 = arith.constant 0 : index
      %c0_31 = arith.constant 0 : index
      %51 = vector.load %arg5[%c0_29, %c0_30, %c0_31] : memref<1x128x128xf32, #tpu.memory_space<vmem>>, vector<1x128x128xf32>
      %52 = vector.shape_cast %51 : vector<1x128x128xf32> to vector<128x128xf32>
      %53 = vector.shape_cast %50 : vector<128x128xf32> to vector<1x128x128xf32>
      tpu.vector_store %arg5[%c0_29, %c0_30, %c0_31], %53 {strides = array<i32>} : memref<1x128x128xf32, #tpu.memory_space<vmem>>, vector<1x128x128xf32>,
    } else {
    }
    return
  }
  func.func @transform_0(%arg0: i32, %arg1: i32, %arg2: i32) -> (i32, i32, i32) {
    %c0_i32 = arith.constant 0 : i32
    %c0_i32_0 = arith.constant 0 : i32
    return %arg0, %arg1, %c0_i32 : i32, i32, i32
  }
  func.func @transform_1(%arg0: i32, %arg1: i32, %arg2: i32) -> (i32, i32, i32) {
    %c0_i32 = arith.constant 0 : i32
    %c0_i32_0 = arith.constant 0 : i32
    return %arg0, %arg2, %c0_i32 : i32, i32, i32
  }
  func.func @transform_2(%arg0: i32, %arg1: i32, %arg2: i32) -> (i32, i32, i32) {
    %c0_i32 = arith.constant 0 : i32
    %c0_i32_0 = arith.constant 0 : i32
    return %arg0, %arg1, %c0_i32 : i32, i32, i32
  }
}

</mosaic_0001>

<llo_original>
// kernel: tpu_custom_call.1
$region0: #{tpu_custom_call.1}
  #allocation0 [shape = 'u32[]', space=smem, size = 0x4, offset = 0x4, fixed_abs, tag = 'smem constant byte address 0x4 - core index']
  #allocation1 [shape = 'u32[72,128]{1,0:T(1,128)}', space=vmem, size = 0x9000, scoped, tag = 'internal scratch']
  #allocation2 [shape = 'f32[128,128]{1,0:T(8,128)}', space=vmem, size = 0x10000, scoped, tag = 'scratch operand']
  #allocation3 [shape = 'f32[128,128]{1,0:T(8,128)}', space=vmem, size = 0x10000, scoped, tag = 'scratch operand']
  #allocation4 [shape = 'f32[128,128]{1,0:T(8,128)}', space=vmem, size = 0x10000, scoped, tag = 'scratch operand']
  #allocation5 [shape = 'f32[128,128]{1,0:T(8,128)}', space=vmem, size = 0x10000, scoped, tag = 'scratch operand']
  %s0 = inlined_call_operand.hbm [shape: f32[2,128,128], index: 0, kind: input, shape index: {}]
  %s1 = inlined_call_operand.hbm [shape: f32[2,128,128], index: 1, kind: input, shape index: {}]
  %s2 = inlined_call_operand.hbm [shape: f32[2,128,128], index: 2, kind: output, shape index: {}]
  %s3 = sld [smem:[#allocation0]]
  $region57: #{tpu_custom_call.1} parent=0
    _
  %s5 = ssub.s32 1, %s3
  %s6 = scalar_select 0, %s5, %s3
  $region1: #{tpu_custom_call.1} parent=0
    #allocation6 [shape = 'u8[131072]{0}', space=vmem, size = 0x20000, scoped, tag = 'input window, operand 0']
    #allocation7 [shape = 's32[2]{0}', space=sflag, size = 0x8, scoped, tag = 'scoped memory for tpu_custom_call.1']
    #allocation8 [shape = 's32[2]{0}', space=sflag, size = 0x8, scoped, tag = 'scoped memory for tpu_custom_call.1']
    #allocation9 [shape = 'u8[131072]{0}', space=vmem, size = 0x20000, scoped, tag = 'input window, operand 1']
    #allocation10 [shape = 's32[2]{0}', space=sflag, size = 0x8, scoped, tag = 'scoped memory for tpu_custom_call.1']
    #allocation11 [shape = 'u8[131072]{0}', space=vmem, size = 0x20000, scoped, tag = 'output window, operand 0']
    %7 = vsyncpa [#allocation7], 0
    %s8 = scalar_lea.sflag [#allocation7], 1
    %9 = vsyncpa %s8, 0
    %10 = vsyncpa [#allocation10], 0
    %s11 = scalar_lea.sflag [#allocation10], 1
    %12 = vsyncpa %s11, 0
    %13 = vsyncpa [#allocation8], 0
    %s14 = scalar_lea.sflag [#allocation8], 1
    %15 = vsyncpa %s14, 0
    loop: start=0, step=1, limit=4
    $region2: #{tpu_custom_call.1} parent=1 // loop_pre_header
      _
    $region3: #{tpu_custom_call.1} parent=1 // loop_header
      %s17 = sphi 0, %s21
      %p18 = scmp.ge.s32.totalorder %s17, 4
      %s24 = sphi 0, %s43
      %s25 = sphi 0, %s39
      %s26 = sphi 0, %s35
      %s27 = sphi 0, %s24
      %s28 = sphi 0, %s25
      %s29 = sphi 0, %s26
      %s30 = sphi 0, %s27
      %s31 = sphi 0, %s28
      %s32 = sphi 0, %s29
      %s48 = sphi 0, %s50
      %s51 = sphi 0, %s48
      %s52 = sphi 0, %s51
      %s68 = sphi 0, %s52
      %s76 = sphi 0, %s78
      %s79 = sphi 0, %s76
      %s80 = sphi 0, %s79
      %s96 = sphi 0, %s80
      %s104 = sphi 0, %s106
      %s107 = sphi 0, %s104
      %s108 = sphi 0, %s107
      %s124 = sphi 0, %s108
    $region4: #{tpu_custom_call.1} parent=1 // loop_header_branch
      %20 = sbr.rel (%p18) target = $region8
    $region5: #{tpu_custom_call.1} parent=1 // loop_body
      %s22 = ssub.s32 %s17, 1
      %s23 = ssub.s32 %s17, 2
      %s33 = sadd.s32 1, %s26
      %p34 = scmp.ge.s32.totalorder %s33, 1
      %s35 = scalar_select %p34, 0, %s33
      %s36 = sadd.s32 1, %s25
      %s37 = scalar_select %p34, %s36, %s25
      %p38 = scmp.ge.s32.totalorder %s37, 1
      %s39 = scalar_select %p38, 0, %s37
      %s40 = sadd.s32 1, %s24
      %s41 = scalar_select %p38, %s40, %s24
      %p42 = scmp.ge.s32.totalorder %s41, 2
      %s43 = scalar_select %p42, 0, %s41
      %s44 = ssub.s32 %s24, %s43
      %s45 = ssub.s32 %s25, %s39
      %s46 = sor.u32 %s44, %s45
      %p47 = scmp.eq.s32.totalorder %s46, 0
      %s49 = sadd.s32 %s48, 1
      %s50 = scalar_select %p47, %s48, %s49
      %p53 = pneg %p47
      %p54 = scmp.eq.s32.totalorder %s17, 1
      %p55 = por %p53, %p54
      %p56 = scmp.ne.s32.totalorder %s48, %s51
      %p57 = scmp.eq.s32.totalorder %s17, 0
      %p58 = por %p56, %p57
      %p59 = scmp.ne.s32.totalorder %s48, %s51
      %p60 = scmp.eq.s32.totalorder %s22, 1
      %p61 = por %p59, %p60
      %p62 = scmp.ne.s32.totalorder %s51, %s52
      %p63 = scmp.eq.s32.totalorder %s22, 0
      %p64 = por %p62, %p63
      %p65 = scmp.ne.s32.totalorder %s51, %s52
      %p66 = scmp.eq.s32.totalorder %s23, 1
      %p67 = por %p65, %p66
      %p69 = scmp.ne.s32.totalorder %s52, %s68
      %p70 = scmp.eq.s32.totalorder %s23, 0
      %p71 = por %p69, %p70
      %s72 = ssub.s32 %s24, %s43
      %s73 = ssub.s32 %s26, %s35
      %s74 = sor.u32 %s72, %s73
      %p75 = scmp.eq.s32.totalorder %s74, 0
      %s77 = sadd.s32 %s76, 1
      %s78 = scalar_select %p75, %s76, %s77
      %p81 = pneg %p75
      %p82 = scmp.eq.s32.totalorder %s17, 1
      %p83 = por %p81, %p82
      %p84 = scmp.ne.s32.totalorder %s76, %s79
      %p85 = scmp.eq.s32.totalorder %s17, 0
      %p86 = por %p84, %p85
      %p87 = scmp.ne.s32.totalorder %s76, %s79
      %p88 = scmp.eq.s32.totalorder %s22, 1
      %p89 = por %p87, %p88
      %p90 = scmp.ne.s32.totalorder %s79, %s80
      %p91 = scmp.eq.s32.totalorder %s22, 0
      %p92 = por %p90, %p91
      %p93 = scmp.ne.s32.totalorder %s79, %s80
      %p94 = scmp.eq.s32.totalorder %s23, 1
      %p95 = por %p93, %p94
      %p97 = scmp.ne.s32.totalorder %s80, %s96
      %p98 = scmp.eq.s32.totalorder %s23, 0
      %p99 = por %p97, %p98
      %s100 = ssub.s32 %s24, %s43
      %s101 = ssub.s32 %s25, %s39
      %s102 = sor.u32 %s100, %s101
      %p103 = scmp.eq.s32.totalorder %s102, 0
      %s105 = sadd.s32 %s104, 1
      %s106 = scalar_select %p103, %s104, %s105
      %p109 = pneg %p103
      %p110 = scmp.eq.s32.totalorder %s17, 1
      %p111 = por %p109, %p110
      %p112 = scmp.ne.s32.totalorder %s104, %s107
      %p113 = scmp.eq.s32.totalorder %s17, 0
      %p114 = por %p112, %p113
      %p115 = scmp.ne.s32.totalorder %s104, %s107
      %p116 = scmp.eq.s32.totalorder %s22, 1
      %p117 = por %p115, %p116
      %p118 = scmp.ne.s32.totalorder %s107, %s108
      %p119 = scmp.eq.s32.totalorder %s22, 0
      %p120 = por %p118, %p119
      %p121 = scmp.ne.s32.totalorder %s107, %s108
      %p122 = scmp.eq.s32.totalorder %s23, 1
      %p123 = por %p121, %p122
      %p125 = scmp.ne.s32.totalorder %s108, %s124
      %p126 = scmp.eq.s32.totalorder %s23, 0
      %p127 = por %p125, %p126
      %p128 = scmp.le.s32.totalorder 1, %s17
      %p129 = scmp.lt.s32.totalorder %s17, 3
      %p130 = pnand %p128, %p129
      %p131 = pneg %p130
      // Predicated region
      $region9: #{tpu_custom_call.1} parent=5 // pred_check
        _
      $region10: #{tpu_custom_call.1} parent=5 // pred_check_branch
        %133 = sbr.rel (%p130) target = $region12
      $region11: #{tpu_custom_call.1} parent=5 // pred_region
        %s134 = ssub.s32 %s17, 1
      $region12: #{tpu_custom_call.1} parent=5 // pred_fallthru
        _
      %p135 = scmp.lt.s32.totalorder %s17, 2
      // Predicated region
      $region13: #{tpu_custom_call.1} parent=5 // pred_check
        %p136 = pneg %p135
      $region14: #{tpu_custom_call.1} parent=5 // pred_check_branch
        %138 = sbr.rel (%p136) target = $region16
      $region15: #{tpu_custom_call.1} parent=5 // pred_region
        // Predicated region
        $region17: #{tpu_custom_call.1} parent=15 // pred_check
          %p139 = pneg %p58
        $region18: #{tpu_custom_call.1} parent=15 // pred_check_branch
          %141 = sbr.rel (%p139) target = $region20
        $region19: #{tpu_custom_call.1} parent=15 // pred_region
          %s142 = sand.u32 %s48, 1
          %s143 = scalar_lea.sflag [#allocation7], %s142
          %s144 = sand.u32 %s48, 1
          %s145 = smul.addr %s144, 128
          %s146 = scalar_lea.vmem [#allocation6], %s145
          %s147 = smul.u32 16, %s25
          %149 = vsyncadd %s143, 0
          %s150 = smul.addr %s24, 16
          %s151 = sadd.s32 %s147, %s150
          %s152 = smul.addr %s151, 8
          %s153 = scalar_lea.hbm %s0, %s152
          %s154 = sshll.u32 %s153, 4
          %s155 = int_to_ptr.hbm [resolvable:$true] %s154
          %s156 = sshll.u32 %s146, 4
          %s157 = int_to_ptr.vmem [resolvable:$true] %s156
          %162 = dma.hbm_to_vmem [thread:$0]  %s155, 2048, %s157, %s143, 128, 128, 8
        $region20: #{tpu_custom_call.1} parent=15 // pred_fallthru
          _
        // Predicated region
        $region21: #{tpu_custom_call.1} parent=15 // pred_check
          %p163 = pneg %p86
        $region22: #{tpu_custom_call.1} parent=15 // pred_check_branch
          %165 = sbr.rel (%p163) target = $region24
        $region23: #{tpu_custom_call.1} parent=15 // pred_region
          %s166 = sand.u32 %s76, 1
          %s167 = scalar_lea.sflag [#allocation10], %s166
          %s168 = sand.u32 %s76, 1
          %s169 = smul.addr %s168, 128
          %s170 = scalar_lea.vmem [#allocation9], %s169
          %s171 = smul.u32 16, %s26
          %173 = vsyncadd %s167, 0
          %s174 = smul.addr %s24, 16
          %s175 = sadd.s32 %s171, %s174
          %s176 = smul.addr %s175, 8
          %s177 = scalar_lea.hbm %s1, %s176
          %s178 = sshll.u32 %s177, 4
          %s179 = int_to_ptr.hbm [resolvable:$true] %s178
          %s180 = sshll.u32 %s170, 4
          %s181 = int_to_ptr.vmem [resolvable:$true] %s180
          %186 = dma.hbm_to_vmem [thread:$0]  %s179, 2048, %s181, %s167, 128, 128, 8
        $region24: #{tpu_custom_call.1} parent=15 // pred_fallthru
          _
      $region16: #{tpu_custom_call.1} parent=5 // pred_fallthru
        _
      %p187 = scmp.le.s32.totalorder 1, %s17
      %p188 = scmp.lt.s32.totalorder %s17, 3
      %p189 = pnand %p187, %p188
      %p190 = pneg %p189
      // Predicated region
      $region25: #{tpu_custom_call.1} parent=5 // pred_check
        _
      $region26: #{tpu_custom_call.1} parent=5 // pred_check_branch
        %192 = sbr.rel (%p189) target = $region28
      $region27: #{tpu_custom_call.1} parent=5 // pred_region
        %s193 = ssub.s32 %s17, 1
        %s194 = sand.u32 %s51, 1
        %s195 = scalar_lea.sflag [#allocation7], %s194
        %s196 = sand.u32 %s51, 1
        %s197 = smul.addr %s196, 128
        %s198 = scalar_lea.vmem [#allocation6], %s197
        // Predicated region
        $region29: #{tpu_custom_call.1} parent=27 // pred_check
          %p199 = pneg %p64
        $region30: #{tpu_custom_call.1} parent=27 // pred_check_branch
          %201 = sbr.rel (%p199) target = $region32
        $region31: #{tpu_custom_call.1} parent=27 // pred_region
          %203 = dma.done %s195, 2048
        $region32: #{tpu_custom_call.1} parent=27 // pred_fallthru
          _
        %s204 = sand.u32 %s79, 1
        %s205 = scalar_lea.sflag [#allocation10], %s204
        %s206 = sand.u32 %s79, 1
        %s207 = smul.addr %s206, 128
        %s208 = scalar_lea.vmem [#allocation9], %s207
        // Predicated region
        $region33: #{tpu_custom_call.1} parent=27 // pred_check
          %p209 = pneg %p92
        $region34: #{tpu_custom_call.1} parent=27 // pred_check_branch
          %211 = sbr.rel (%p209) target = $region36
        $region35: #{tpu_custom_call.1} parent=27 // pred_region
          %213 = dma.done %s205, 2048
        $region36: #{tpu_custom_call.1} parent=27 // pred_fallthru
          _
        %s214 = sand.u32 %s51, 1
        %s215 = scalar_lea.sflag [#allocation7], %s214
        %s216 = sand.u32 %s51, 1
        %s217 = smul.addr %s216, 128
        %s218 = scalar_lea.vmem [#allocation6], %s217
        %p219 = pneg %p64
        %p220 = pneg %p61
        %s221 = sand.u32 %s79, 1
        %s222 = scalar_lea.sflag [#allocation10], %s221
        %s223 = sand.u32 %s79, 1
        %s224 = smul.addr %s223, 128
        %s225 = scalar_lea.vmem [#allocation9], %s224
        %p226 = pneg %p92
        %p227 = pneg %p89
        %p228 = pneg %p120
        %p229 = pneg %p117
        %s230 = sand.u32 %s107, 1
        %s231 = scalar_lea.sflag [#allocation8], %s230
        %s232 = sand.u32 %s107, 1
        %s233 = smul.addr %s232, 128
        %s234 = scalar_lea.vmem [#allocation11], %s233
        %s235 = smul.u32 16, %s28
        %s236 = smul.u32 16, %s29
        %s237 = smul.u32 16, %s28
        %p238 = scmp.eq.s32.totalorder %s29, 0
        // Predicated region
        $region37: #{tpu_custom_call.1} parent=27 // pred_check
          %p239 = pneg %p238
        $region38: #{tpu_custom_call.1} parent=27 // pred_check_branch
          %241 = sbr.rel (%p239) target = $region40
        $region39: #{tpu_custom_call.1} parent=27 // pred_region
          %v242 = vld [vmem:[%s198] sm:$0xff]
          %v243 = vld [vmem:[%s198 + $0x8] sm:$0xff]
          %v244 = vld [vmem:[%s198 + $0x10] sm:$0xff]
          %v245 = vld [vmem:[%s198 + $0x18] sm:$0xff]
          %v246 = vld [vmem:[%s198 + $0x20] sm:$0xff]
          %v247 = vld [vmem:[%s198 + $0x28] sm:$0xff]
          %v248 = vld [vmem:[%s198 + $0x30] sm:$0xff]
          %v249 = vld [vmem:[%s198 + $0x38] sm:$0xff]
          %v250 = vld [vmem:[%s198 + $0x40] sm:$0xff]
          %v251 = vld [vmem:[%s198 + $0x48] sm:$0xff]
          %v252 = vld [vmem:[%s198 + $0x50] sm:$0xff]
          %v253 = vld [vmem:[%s198 + $0x58] sm:$0xff]
          %v254 = vld [vmem:[%s198 + $0x60] sm:$0xff]
          %v255 = vld [vmem:[%s198 + $0x68] sm:$0xff]
          %v256 = vld [vmem:[%s198 + $0x70] sm:$0xff]
          %v257 = vld [vmem:[%s198 + $0x78] sm:$0xff]
          %v258 = vmul.f32 %v242, 0.17677669
          %v259 = vmul.f32 %v243, 0.17677669
          %v260 = vmul.f32 %v244, 0.17677669
          %v261 = vmul.f32 %v245, 0.17677669
          %v262 = vmul.f32 %v246, 0.17677669
          %v263 = vmul.f32 %v247, 0.17677669
          %v264 = vmul.f32 %v248, 0.17677669
          %v265 = vmul.f32 %v249, 0.17677669
          %v266 = vmul.f32 %v250, 0.17677669
          %v267 = vmul.f32 %v251, 0.17677669
          %v268 = vmul.f32 %v252, 0.17677669
          %v269 = vmul.f32 %v253, 0.17677669
          %v270 = vmul.f32 %v254, 0.17677669
          %v271 = vmul.f32 %v255, 0.17677669
          %v272 = vmul.f32 %v256, 0.17677669
          %v273 = vmul.f32 %v257, 0.17677669
          %274 = vst [vmem:[#allocation2] sm:$0xff] %v258
          %275 = vst [vmem:[#allocation2 + $0x8] sm:$0xff] %v259
          %276 = vst [vmem:[#allocation2 + $0x10] sm:$0xff] %v260
          %277 = vst [vmem:[#allocation2 + $0x18] sm:$0xff] %v261
          %278 = vst [vmem:[#allocation2 + $0x20] sm:$0xff] %v262
          %279 = vst [vmem:[#allocation2 + $0x28] sm:$0xff] %v263
          %280 = vst [vmem:[#allocation2 + $0x30] sm:$0xff] %v264
          %281 = vst [vmem:[#allocation2 + $0x38] sm:$0xff] %v265
          %282 = vst [vmem:[#allocation2 + $0x40] sm:$0xff] %v266
          %283 = vst [vmem:[#allocation2 + $0x48] sm:$0xff] %v267
          %284 = vst [vmem:[#allocation2 + $0x50] sm:$0xff] %v268
          %285 = vst [vmem:[#allocation2 + $0x58] sm:$0xff] %v269
          %286 = vst [vmem:[#allocation2 + $0x60] sm:$0xff] %v270
          %287 = vst [vmem:[#allocation2 + $0x68] sm:$0xff] %v271
          %288 = vst [vmem:[#allocation2 + $0x70] sm:$0xff] %v272
          %289 = vst [vmem:[#allocation2 + $0x78] sm:$0xff] %v273
          %290 = vst [vmem:[#allocation3] sm:$0xff] -inf
          %291 = vst [vmem:[#allocation3 + $0x8] sm:$0xff] -inf
          %292 = vst [vmem:[#allocation3 + $0x10] sm:$0xff] -inf
          %293 = vst [vmem:[#allocation3 + $0x18] sm:$0xff] -inf
          %294 = vst [vmem:[#allocation3 + $0x20] sm:$0xff] -inf
          %295 = vst [vmem:[#allocation3 + $0x28] sm:$0xff] -inf
          %296 = vst [vmem:[#allocation3 + $0x30] sm:$0xff] -inf
          %297 = vst [vmem:[#allocation3 + $0x38] sm:$0xff] -inf
          %298 = vst [vmem:[#allocation3 + $0x40] sm:$0xff] -inf
          %299 = vst [vmem:[#allocation3 + $0x48] sm:$0xff] -inf
          %300 = vst [vmem:[#allocation3 + $0x50] sm:$0xff] -inf
          %301 = vst [vmem:[#allocation3 + $0x58] sm:$0xff] -inf
          %302 = vst [vmem:[#allocation3 + $0x60] sm:$0xff] -inf
          %303 = vst [vmem:[#allocation3 + $0x68] sm:$0xff] -inf
          %304 = vst [vmem:[#allocation3 + $0x70] sm:$0xff] -inf
          %305 = vst [vmem:[#allocation3 + $0x78] sm:$0xff] -inf
          %306 = vst [vmem:[#allocation4] sm:$0xff] 0.0
          %307 = vst [vmem:[#allocation4 + $0x8] sm:$0xff] 0.0
          %308 = vst [vmem:[#allocation4 + $0x10] sm:$0xff] 0.0
          %309 = vst [vmem:[#allocation4 + $0x18] sm:$0xff] 0.0
          %310 = vst [vmem:[#allocation4 + $0x20] sm:$0xff] 0.0
          %311 = vst [vmem:[#allocation4 + $0x28] sm:$0xff] 0.0
          %312 = vst [vmem:[#allocation4 + $0x30] sm:$0xff] 0.0
          %313 = vst [vmem:[#allocation4 + $0x38] sm:$0xff] 0.0
          %314 = vst [vmem:[#allocation4 + $0x40] sm:$0xff] 0.0
          %315 = vst [vmem:[#allocation4 + $0x48] sm:$0xff] 0.0
          %316 = vst [vmem:[#allocation4 + $0x50] sm:$0xff] 0.0
          %317 = vst [vmem:[#allocation4 + $0x58] sm:$0xff] 0.0
          %318 = vst [vmem:[#allocation4 + $0x60] sm:$0xff] 0.0
          %319 = vst [vmem:[#allocation4 + $0x68] sm:$0xff] 0.0
          %320 = vst [vmem:[#allocation4 + $0x70] sm:$0xff] 0.0
          %321 = vst [vmem:[#allocation4 + $0x78] sm:$0xff] 0.0
          %322 = vst [vmem:[#allocation5] sm:$0xff] 0.0
          %323 = vst [vmem:[#allocation5 + $0x8] sm:$0xff] 0.0
          %324 = vst [vmem:[#allocation5 + $0x10] sm:$0xff] 0.0
          %325 = vst [vmem:[#allocation5 + $0x18] sm:$0xff] 0.0
          %326 = vst [vmem:[#allocation5 + $0x20] sm:$0xff] 0.0
          %327 = vst [vmem:[#allocation5 + $0x28] sm:$0xff] 0.0
          %328 = vst [vmem:[#allocation5 + $0x30] sm:$0xff] 0.0
          %329 = vst [vmem:[#allocation5 + $0x38] sm:$0xff] 0.0
          %330 = vst [vmem:[#allocation5 + $0x40] sm:$0xff] 0.0
          %331 = vst [vmem:[#allocation5 + $0x48] sm:$0xff] 0.0
          %332 = vst [vmem:[#allocation5 + $0x50] sm:$0xff] 0.0
          %333 = vst [vmem:[#allocation5 + $0x58] sm:$0xff] 0.0
          %334 = vst [vmem:[#allocation5 + $0x60] sm:$0xff] 0.0
          %335 = vst [vmem:[#allocation5 + $0x68] sm:$0xff] 0.0
          %336 = vst [vmem:[#allocation5 + $0x70] sm:$0xff] 0.0
          %337 = vst [vmem:[#allocation5 + $0x78] sm:$0xff] 0.0
        $region40: #{tpu_custom_call.1} parent=27 // pred_fallthru
          _
        %v338 = vld [vmem:[#allocation2] sm:$0xff]
        %v339 = vld [vmem:[#allocation2 + $0x8] sm:$0xff]
        %v340 = vld [vmem:[#allocation2 + $0x10] sm:$0xff]
        %v341 = vld [vmem:[#allocation2 + $0x18] sm:$0xff]
        %v342 = vld [vmem:[#allocation2 + $0x20] sm:$0xff]
        %v343 = vld [vmem:[#allocation2 + $0x28] sm:$0xff]
        %v344 = vld [vmem:[#allocation2 + $0x30] sm:$0xff]
        %v345 = vld [vmem:[#allocation2 + $0x38] sm:$0xff]
        %v346 = vld [vmem:[#allocation2 + $0x40] sm:$0xff]
        %v347 = vld [vmem:[#allocation2 + $0x48] sm:$0xff]
        %v348 = vld [vmem:[#allocation2 + $0x50] sm:$0xff]
        %v349 = vld [vmem:[#allocation2 + $0x58] sm:$0xff]
        %v350 = vld [vmem:[#allocation2 + $0x60] sm:$0xff]
        %v351 = vld [vmem:[#allocation2 + $0x68] sm:$0xff]
        %v352 = vld [vmem:[#allocation2 + $0x70] sm:$0xff]
        %v353 = vld [vmem:[#allocation2 + $0x78] sm:$0xff]
        %v354 = vld [vmem:[%s208] sm:$0xff]
        %v355 = vld [vmem:[%s208 + $0x8] sm:$0xff]
        %v356 = vld [vmem:[%s208 + $0x10] sm:$0xff]
        %v357 = vld [vmem:[%s208 + $0x18] sm:$0xff]
        %v358 = vld [vmem:[%s208 + $0x20] sm:$0xff]
        %v359 = vld [vmem:[%s208 + $0x28] sm:$0xff]
        %v360 = vld [vmem:[%s208 + $0x30] sm:$0xff]
        %v361 = vld [vmem:[%s208 + $0x38] sm:$0xff]
        %v362 = vld [vmem:[%s208 + $0x40] sm:$0xff]
        %v363 = vld [vmem:[%s208 + $0x48] sm:$0xff]
        %v364 = vld [vmem:[%s208 + $0x50] sm:$0xff]
        %v365 = vld [vmem:[%s208 + $0x58] sm:$0xff]
        %v366 = vld [vmem:[%s208 + $0x60] sm:$0xff]
        %v367 = vld [vmem:[%s208 + $0x68] sm:$0xff]
        %v368 = vld [vmem:[%s208 + $0x70] sm:$0xff]
        %v369 = vld [vmem:[%s208 + $0x78] sm:$0xff]
        %s370 = smul.u32 %s29, 128
        %v371 = vlaneseq
        %v372 = vand.u32 %v371, 127
        %v373 = vstv %s370
        %v374 = vadd.s32 %v373, %v372
        %vm375 = vcmp.lt.s32.totalorder %v374, 8
        %v376 = vsel %vm375, 0.0, -1e+30
        %377 = vmatpush.xpose.msra.mxu0 %v369
        %378 = vmatpush.xpose.msra.mxu0 %v368
        %379 = vmatpush.xpose.msra.mxu0 %v367
        %380 = vmatpush.xpose.msra.mxu0 %v366
        %381 = vmatpush.xpose.msra.mxu0 %v365
        %382 = vmatpush.xpose.msra.mxu0 %v364
        %383 = vmatpush.xpose.msra.mxu0 %v363
        %384 = vmatpush.xpose.msra.mxu0 %v362
        %385 = vmatpush.xpose.msra.mxu0 %v361
        %386 = vmatpush.xpose.msra.mxu0 %v360
        %387 = vmatpush.xpose.msra.mxu0 %v359
        %388 = vmatpush.xpose.msra.mxu0 %v358
        %389 = vmatpush.xpose.msra.mxu0 %v357
        %390 = vmatpush.xpose.msra.mxu0 %v356
        %391 = vmatpush.xpose.msra.mxu0 %v355
        %392 = vmatpush.xpose.msra.mxu0 %v354
        %393 = vmatmul.f32.gmra.mxu0 %v338
        %v394 = vpop.f32.mrf.mxu0
        %v395 = vadd.f32 %v376, %v394
        %396 = vmatmul.f32.gmra.mxu0 %v339
        %v397 = vpop.f32.mrf.mxu0
        %v398 = vadd.f32 %v376, %v397
        %399 = vmatmul.f32.gmra.mxu0 %v340
        %v400 = vpop.f32.mrf.mxu0
        %v401 = vadd.f32 %v376, %v400
        %402 = vmatmul.f32.gmra.mxu0 %v341
        %v403 = vpop.f32.mrf.mxu0
        %v404 = vadd.f32 %v376, %v403
        %405 = vmatmul.f32.gmra.mxu0 %v342
        %v406 = vpop.f32.mrf.mxu0
        %v407 = vadd.f32 %v376, %v406
        %408 = vmatmul.f32.gmra.mxu0 %v343
        %v409 = vpop.f32.mrf.mxu0
        %v410 = vadd.f32 %v376, %v409
        %411 = vmatmul.f32.gmra.mxu0 %v344
        %v412 = vpop.f32.mrf.mxu0
        %v413 = vadd.f32 %v376, %v412
        %414 = vmatmul.f32.gmra.mxu0 %v345
        %v415 = vpop.f32.mrf.mxu0
        %v416 = vadd.f32 %v376, %v415
        %417 = vmatmul.f32.gmra.mxu0 %v346
        %v418 = vpop.f32.mrf.mxu0
        %v419 = vadd.f32 %v376, %v418
        %420 = vmatmul.f32.gmra.mxu0 %v347
        %v421 = vpop.f32.mrf.mxu0
        %v422 = vadd.f32 %v376, %v421
        %423 = vmatmul.f32.gmra.mxu0 %v348
        %v424 = vpop.f32.mrf.mxu0
        %v425 = vadd.f32 %v376, %v424
        %426 = vmatmul.f32.gmra.mxu0 %v349
        %v427 = vpop.f32.mrf.mxu0
        %v428 = vadd.f32 %v376, %v427
        %429 = vmatmul.f32.gmra.mxu0 %v350
        %v430 = vpop.f32.mrf.mxu0
        %v431 = vadd.f32 %v376, %v430
        %432 = vmatmul.f32.gmra.mxu0 %v351
        %v433 = vpop.f32.mrf.mxu0
        %v434 = vadd.f32 %v376, %v433
        %435 = vmatmul.f32.gmra.mxu0 %v352
        %v436 = vpop.f32.mrf.mxu0
        %v437 = vadd.f32 %v376, %v436
        %438 = vmatmul.f32.gmra.mxu0 %v353
        %v439 = vpop.f32.mrf.mxu0
        %v440 = vadd.f32 %v376, %v439
        %441 = vdwg.mxu0
        %v442 = vld [vmem:[#allocation3] sm:$0xff]
        %v443 = vld [vmem:[#allocation3 + $0x8] sm:$0xff]
        %v444 = vld [vmem:[#allocation3 + $0x10] sm:$0xff]
        %v445 = vld [vmem:[#allocation3 + $0x18] sm:$0xff]
        %v446 = vld [vmem:[#allocation3 + $0x20] sm:$0xff]
        %v447 = vld [vmem:[#allocation3 + $0x28] sm:$0xff]
        %v448 = vld [vmem:[#allocation3 + $0x30] sm:$0xff]
        %v449 = vld [vmem:[#allocation3 + $0x38] sm:$0xff]
        %v450 = vld [vmem:[#allocation3 + $0x40] sm:$0xff]
        %v451 = vld [vmem:[#allocation3 + $0x48] sm:$0xff]
        %v452 = vld [vmem:[#allocation3 + $0x50] sm:$0xff]
        %v453 = vld [vmem:[#allocation3 + $0x58] sm:$0xff]
        %v454 = vld [vmem:[#allocation3 + $0x60] sm:$0xff]
        %v455 = vld [vmem:[#allocation3 + $0x68] sm:$0xff]
        %v456 = vld [vmem:[#allocation3 + $0x70] sm:$0xff]
        %v457 = vld [vmem:[#allocation3 + $0x78] sm:$0xff]
        %458 = vmax.xlane.f32.xlu0 %v395
        %v459 = vpop.xlane.xlu0 %458
        %460 = vmax.xlane.f32.xlu0 %v398
        %v461 = vpop.xlane.xlu0 %460
        %462 = vmax.xlane.f32.xlu0 %v401
        %v463 = vpop.xlane.xlu0 %462
        %464 = vmax.xlane.f32.xlu0 %v404
        %v465 = vpop.xlane.xlu0 %464
        %466 = vmax.xlane.f32.xlu0 %v407
        %v467 = vpop.xlane.xlu0 %466
        %468 = vmax.xlane.f32.xlu0 %v410
        %v469 = vpop.xlane.xlu0 %468
        %470 = vmax.xlane.f32.xlu0 %v413
        %v471 = vpop.xlane.xlu0 %470
        %472 = vmax.xlane.f32.xlu0 %v416
        %v473 = vpop.xlane.xlu0 %472
        %474 = vmax.xlane.f32.xlu0 %v419
        %v475 = vpop.xlane.xlu0 %474
        %476 = vmax.xlane.f32.xlu0 %v422
        %v477 = vpop.xlane.xlu0 %476
        %478 = vmax.xlane.f32.xlu0 %v425
        %v479 = vpop.xlane.xlu0 %478
        %480 = vmax.xlane.f32.xlu0 %v428
        %v481 = vpop.xlane.xlu0 %480
        %482 = vmax.xlane.f32.xlu0 %v431
        %v483 = vpop.xlane.xlu0 %482
        %484 = vmax.xlane.f32.xlu0 %v434
        %v485 = vpop.xlane.xlu0 %484
        %486 = vmax.xlane.f32.xlu0 %v437
        %v487 = vpop.xlane.xlu0 %486
        %488 = vmax.xlane.f32.xlu0 %v440
        %v489 = vpop.xlane.xlu0 %488
        %v490 = vmax.f32 %v442, %v459
        %v491 = vmax.f32 %v443, %v461
        %v492 = vmax.f32 %v444, %v463
        %v493 = vmax.f32 %v445, %v465
        %v494 = vmax.f32 %v446, %v467
        %v495 = vmax.f32 %v447, %v469
        %v496 = vmax.f32 %v448, %v471
        %v497 = vmax.f32 %v449, %v473
        %v498 = vmax.f32 %v450, %v475
        %v499 = vmax.f32 %v451, %v477
        %v500 = vmax.f32 %v452, %v479
        %v501 = vmax.f32 %v453, %v481
        %v502 = vmax.f32 %v454, %v483
        %v503 = vmax.f32 %v455, %v485
        %v504 = vmax.f32 %v456, %v487
        %v505 = vmax.f32 %v457, %v489
        %v506 = vsub.f32 %v442, %v490
        %v507 = vsub.f32 %v443, %v491
        %v508 = vsub.f32 %v444, %v492
        %v509 = vsub.f32 %v445, %v493
        %v510 = vsub.f32 %v446, %v494
        %v511 = vsub.f32 %v447, %v495
        %v512 = vsub.f32 %v448, %v496
        %v513 = vsub.f32 %v449, %v497
        %v514 = vsub.f32 %v450, %v498
        %v515 = vsub.f32 %v451, %v499
        %v516 = vsub.f32 %v452, %v500
        %v517 = vsub.f32 %v453, %v501
        %v518 = vsub.f32 %v454, %v502
        %v519 = vsub.f32 %v455, %v503
        %v520 = vsub.f32 %v456, %v504
        %v521 = vsub.f32 %v457, %v505
        %v522 = vmul.f32 %v506, 1.442695
        %v523 = vpow.pop %v522
        %v524 = vmul.f32 %v507, 1.442695
        %v525 = vpow.pop %v524
        %v526 = vmul.f32 %v508, 1.442695
        %v527 = vpow.pop %v526
        %v528 = vmul.f32 %v509, 1.442695
        %v529 = vpow.pop %v528
        %v530 = vmul.f32 %v510, 1.442695
        %v531 = vpow.pop %v530
        %v532 = vmul.f32 %v511, 1.442695
        %v533 = vpow.pop %v532
        %v534 = vmul.f32 %v512, 1.442695
        %v535 = vpow.pop %v534
        %v536 = vmul.f32 %v513, 1.442695
        %v537 = vpow.pop %v536
        %v538 = vmul.f32 %v514, 1.442695
        %v539 = vpow.pop %v538
        %v540 = vmul.f32 %v515, 1.442695
        %v541 = vpow.pop %v540
        %v542 = vmul.f32 %v516, 1.442695
        %v543 = vpow.pop %v542
        %v544 = vmul.f32 %v517, 1.442695
        %v545 = vpow.pop %v544
        %v546 = vmul.f32 %v518, 1.442695
        %v547 = vpow.pop %v546
        %v548 = vmul.f32 %v519, 1.442695
        %v549 = vpow.pop %v548
        %v550 = vmul.f32 %v520, 1.442695
        %v551 = vpow.pop %v550
        %v552 = vmul.f32 %v521, 1.442695
        %v553 = vpow.pop %v552
        %v554 = vsub.f32 %v395, %v490
        %v555 = vsub.f32 %v398, %v491
        %v556 = vsub.f32 %v401, %v492
        %v557 = vsub.f32 %v404, %v493
        %v558 = vsub.f32 %v407, %v494
        %v559 = vsub.f32 %v410, %v495
        %v560 = vsub.f32 %v413, %v496
        %v561 = vsub.f32 %v416, %v497
        %v562 = vsub.f32 %v419, %v498
        %v563 = vsub.f32 %v422, %v499
        %v564 = vsub.f32 %v425, %v500
        %v565 = vsub.f32 %v428, %v501
        %v566 = vsub.f32 %v431, %v502
        %v567 = vsub.f32 %v434, %v503
        %v568 = vsub.f32 %v437, %v504
        %v569 = vsub.f32 %v440, %v505
        %v570 = vmul.f32 %v554, 1.442695
        %v571 = vpow.pop %v570
        %v572 = vmul.f32 %v555, 1.442695
        %v573 = vpow.pop %v572
        %v574 = vmul.f32 %v556, 1.442695
        %v575 = vpow.pop %v574
        %v576 = vmul.f32 %v557, 1.442695
        %v577 = vpow.pop %v576
        %v578 = vmul.f32 %v558, 1.442695
        %v579 = vpow.pop %v578
        %v580 = vmul.f32 %v559, 1.442695
        %v581 = vpow.pop %v580
        %v582 = vmul.f32 %v560, 1.442695
        %v583 = vpow.pop %v582
        %v584 = vmul.f32 %v561, 1.442695
        %v585 = vpow.pop %v584
        %v586 = vmul.f32 %v562, 1.442695
        %v587 = vpow.pop %v586
        %v588 = vmul.f32 %v563, 1.442695
        %v589 = vpow.pop %v588
        %v590 = vmul.f32 %v564, 1.442695
        %v591 = vpow.pop %v590
        %v592 = vmul.f32 %v565, 1.442695
        %v593 = vpow.pop %v592
        %v594 = vmul.f32 %v566, 1.442695
        %v595 = vpow.pop %v594
        %v596 = vmul.f32 %v567, 1.442695
        %v597 = vpow.pop %v596
        %v598 = vmul.f32 %v568, 1.442695
        %v599 = vpow.pop %v598
        %v600 = vmul.f32 %v569, 1.442695
        %v601 = vpow.pop %v600
        %602 = vadd.xlane.f32.xlu0 %v571
        %v603 = vpop.xlane.xlu0 %602
        %604 = vadd.xlane.f32.xlu0 %v573
        %v605 = vpop.xlane.xlu0 %604
        %606 = vadd.xlane.f32.xlu0 %v575
        %v607 = vpop.xlane.xlu0 %606
        %608 = vadd.xlane.f32.xlu0 %v577
        %v609 = vpop.xlane.xlu0 %608
        %610 = vadd.xlane.f32.xlu0 %v579
        %v611 = vpop.xlane.xlu0 %610
        %612 = vadd.xlane.f32.xlu0 %v581
        %v613 = vpop.xlane.xlu0 %612
        %614 = vadd.xlane.f32.xlu0 %v583
        %v615 = vpop.xlane.xlu0 %614
        %616 = vadd.xlane.f32.xlu0 %v585
        %v617 = vpop.xlane.xlu0 %616
        %618 = vadd.xlane.f32.xlu0 %v587
        %v619 = vpop.xlane.xlu0 %618
        %620 = vadd.xlane.f32.xlu0 %v589
        %v621 = vpop.xlane.xlu0 %620
        %622 = vadd.xlane.f32.xlu0 %v591
        %v623 = vpop.xlane.xlu0 %622
        %624 = vadd.xlane.f32.xlu0 %v593
        %v625 = vpop.xlane.xlu0 %624
        %626 = vadd.xlane.f32.xlu0 %v595
        %v627 = vpop.xlane.xlu0 %626
        %628 = vadd.xlane.f32.xlu0 %v597
        %v629 = vpop.xlane.xlu0 %628
        %630 = vadd.xlane.f32.xlu0 %v599
        %v631 = vpop.xlane.xlu0 %630
        %632 = vadd.xlane.f32.xlu0 %v601
        %v633 = vpop.xlane.xlu0 %632
        %v634 = vld [vmem:[#allocation4] sm:$0xff]
        %v635 = vld [vmem:[#allocation4 + $0x8] sm:$0xff]
        %v636 = vld [vmem:[#allocation4 + $0x10] sm:$0xff]
        %v637 = vld [vmem:[#allocation4 + $0x18] sm:$0xff]
        %v638 = vld [vmem:[#allocation4 + $0x20] sm:$0xff]
        %v639 = vld [vmem:[#allocation4 + $0x28] sm:$0xff]
        %v640 = vld [vmem:[#allocation4 + $0x30] sm:$0xff]
        %v641 = vld [vmem:[#allocation4 + $0x38] sm:$0xff]
        %v642 = vld [vmem:[#allocation4 + $0x40] sm:$0xff]
        %v643 = vld [vmem:[#allocation4 + $0x48] sm:$0xff]
        %v644 = vld [vmem:[#allocation4 + $0x50] sm:$0xff]
        %v645 = vld [vmem:[#allocation4 + $0x58] sm:$0xff]
        %v646 = vld [vmem:[#allocation4 + $0x60] sm:$0xff]
        %v647 = vld [vmem:[#allocation4 + $0x68] sm:$0xff]
        %v648 = vld [vmem:[#allocation4 + $0x70] sm:$0xff]
        %v649 = vld [vmem:[#allocation4 + $0x78] sm:$0xff]
        %v650 = vmul.f32 %v523, %v634
        %v651 = vmul.f32 %v525, %v635
        %v652 = vmul.f32 %v527, %v636
        %v653 = vmul.f32 %v529, %v637
        %v654 = vmul.f32 %v531, %v638
        %v655 = vmul.f32 %v533, %v639
        %v656 = vmul.f32 %v535, %v640
        %v657 = vmul.f32 %v537, %v641
        %v658 = vmul.f32 %v539, %v642
        %v659 = vmul.f32 %v541, %v643
        %v660 = vmul.f32 %v543, %v644
        %v661 = vmul.f32 %v545, %v645
        %v662 = vmul.f32 %v547, %v646
        %v663 = vmul.f32 %v549, %v647
        %v664 = vmul.f32 %v551, %v648
        %v665 = vmul.f32 %v553, %v649
        %v666 = vadd.f32 %v650, %v603
        %v667 = vadd.f32 %v651, %v605
        %v668 = vadd.f32 %v652, %v607
        %v669 = vadd.f32 %v653, %v609
        %v670 = vadd.f32 %v654, %v611
        %v671 = vadd.f32 %v655, %v613
        %v672 = vadd.f32 %v656, %v615
        %v673 = vadd.f32 %v657, %v617
        %v674 = vadd.f32 %v658, %v619
        %v675 = vadd.f32 %v659, %v621
        %v676 = vadd.f32 %v660, %v623
        %v677 = vadd.f32 %v661, %v625
        %v678 = vadd.f32 %v662, %v627
        %v679 = vadd.f32 %v663, %v629
        %v680 = vadd.f32 %v664, %v631
        %v681 = vadd.f32 %v665, %v633
        %682 = vst [vmem:[#allocation4] sm:$0xff] %v666
        %683 = vst [vmem:[#allocation4 + $0x8] sm:$0xff] %v667
        %684 = vst [vmem:[#allocation4 + $0x10] sm:$0xff] %v668
        %685 = vst [vmem:[#allocation4 + $0x18] sm:$0xff] %v669
        %686 = vst [vmem:[#allocation4 + $0x20] sm:$0xff] %v670
        %687 = vst [vmem:[#allocation4 + $0x28] sm:$0xff] %v671
        %688 = vst [vmem:[#allocation4 + $0x30] sm:$0xff] %v672
        %689 = vst [vmem:[#allocation4 + $0x38] sm:$0xff] %v673
        %690 = vst [vmem:[#allocation4 + $0x40] sm:$0xff] %v674
        %691 = vst [vmem:[#allocation4 + $0x48] sm:$0xff] %v675
        %692 = vst [vmem:[#allocation4 + $0x50] sm:$0xff] %v676
        %693 = vst [vmem:[#allocation4 + $0x58] sm:$0xff] %v677
        %694 = vst [vmem:[#allocation4 + $0x60] sm:$0xff] %v678
        %695 = vst [vmem:[#allocation4 + $0x68] sm:$0xff] %v679
        %696 = vst [vmem:[#allocation4 + $0x70] sm:$0xff] %v680
        %697 = vst [vmem:[#allocation4 + $0x78] sm:$0xff] %v681
        %v698 = vld [vmem:[#allocation5] sm:$0xff]
        %v699 = vld [vmem:[#allocation5 + $0x8] sm:$0xff]
        %v700 = vld [vmem:[#allocation5 + $0x10] sm:$0xff]
        %v701 = vld [vmem:[#allocation5 + $0x18] sm:$0xff]
        %v702 = vld [vmem:[#allocation5 + $0x20] sm:$0xff]
        %v703 = vld [vmem:[#allocation5 + $0x28] sm:$0xff]
        %v704 = vld [vmem:[#allocation5 + $0x30] sm:$0xff]
        %v705 = vld [vmem:[#allocation5 + $0x38] sm:$0xff]
        %v706 = vld [vmem:[#allocation5 + $0x40] sm:$0xff]
        %v707 = vld [vmem:[#allocation5 + $0x48] sm:$0xff]
        %v708 = vld [vmem:[#allocation5 + $0x50] sm:$0xff]
        %v709 = vld [vmem:[#allocation5 + $0x58] sm:$0xff]
        %v710 = vld [vmem:[#allocation5 + $0x60] sm:$0xff]
        %v711 = vld [vmem:[#allocation5 + $0x68] sm:$0xff]
        %v712 = vld [vmem:[#allocation5 + $0x70] sm:$0xff]
        %v713 = vld [vmem:[#allocation5 + $0x78] sm:$0xff]
        %v714 = vmul.f32 %v698, %v523
        %v715 = vmul.f32 %v699, %v525
        %v716 = vmul.f32 %v700, %v527
        %v717 = vmul.f32 %v701, %v529
        %v718 = vmul.f32 %v702, %v531
        %v719 = vmul.f32 %v703, %v533
        %v720 = vmul.f32 %v704, %v535
        %v721 = vmul.f32 %v705, %v537
        %v722 = vmul.f32 %v706, %v539
        %v723 = vmul.f32 %v707, %v541
        %v724 = vmul.f32 %v708, %v543
        %v725 = vmul.f32 %v709, %v545
        %v726 = vmul.f32 %v710, %v547
        %v727 = vmul.f32 %v711, %v549
        %v728 = vmul.f32 %v712, %v551
        %v729 = vmul.f32 %v713, %v553
        %730 = vmatpush.msra.mxu0 %v369
        %731 = vmatpush.msra.mxu0 %v368
        %732 = vmatpush.msra.mxu0 %v367
        %733 = vmatpush.msra.mxu0 %v366
        %734 = vmatpush.msra.mxu0 %v365
        %735 = vmatpush.msra.mxu0 %v364
        %736 = vmatpush.msra.mxu0 %v363
        %737 = vmatpush.msra.mxu0 %v362
        %738 = vmatpush.msra.mxu0 %v361
        %739 = vmatpush.msra.mxu0 %v360
        %740 = vmatpush.msra.mxu0 %v359
        %741 = vmatpush.msra.mxu0 %v358
        %742 = vmatpush.msra.mxu0 %v357
        %743 = vmatpush.msra.mxu0 %v356
        %744 = vmatpush.msra.mxu0 %v355
        %745 = vmatpush.msra.mxu0 %v354
        %746 = vmatmul.f32.gmra.mxu0 %v571
        %v747 = vpop.f32.mrf.mxu0
        %v748 = vadd.f32 0.0, %v747
        %749 = vmatmul.f32.gmra.mxu0 %v573
        %v750 = vpop.f32.mrf.mxu0
        %v751 = vadd.f32 0.0, %v750
        %752 = vmatmul.f32.gmra.mxu0 %v575
        %v753 = vpop.f32.mrf.mxu0
        %v754 = vadd.f32 0.0, %v753
        %755 = vmatmul.f32.gmra.mxu0 %v577
        %v756 = vpop.f32.mrf.mxu0
        %v757 = vadd.f32 0.0, %v756
        %758 = vmatmul.f32.gmra.mxu0 %v579
        %v759 = vpop.f32.mrf.mxu0
        %v760 = vadd.f32 0.0, %v759
        %761 = vmatmul.f32.gmra.mxu0 %v581
        %v762 = vpop.f32.mrf.mxu0
        %v763 = vadd.f32 0.0, %v762
        %764 = vmatmul.f32.gmra.mxu0 %v583
        %v765 = vpop.f32.mrf.mxu0
        %v766 = vadd.f32 0.0, %v765
        %767 = vmatmul.f32.gmra.mxu0 %v585
        %v768 = vpop.f32.mrf.mxu0
        %v769 = vadd.f32 0.0, %v768
        %770 = vmatmul.f32.gmra.mxu0 %v587
        %v771 = vpop.f32.mrf.mxu0
        %v772 = vadd.f32 0.0, %v771
        %773 = vmatmul.f32.gmra.mxu0 %v589
        %v774 = vpop.f32.mrf.mxu0
        %v775 = vadd.f32 0.0, %v774
        %776 = vmatmul.f32.gmra.mxu0 %v591
        %v777 = vpop.f32.mrf.mxu0
        %v778 = vadd.f32 0.0, %v777
        %779 = vmatmul.f32.gmra.mxu0 %v593
        %v780 = vpop.f32.mrf.mxu0
        %v781 = vadd.f32 0.0, %v780
        %782 = vmatmul.f32.gmra.mxu0 %v595
        %v783 = vpop.f32.mrf.mxu0
        %v784 = vadd.f32 0.0, %v783
        %785 = vmatmul.f32.gmra.mxu0 %v597
        %v786 = vpop.f32.mrf.mxu0
        %v787 = vadd.f32 0.0, %v786
        %788 = vmatmul.f32.gmra.mxu0 %v599
        %v789 = vpop.f32.mrf.mxu0
        %v790 = vadd.f32 0.0, %v789
        %791 = vmatmul.f32.gmra.mxu0 %v601
        %v792 = vpop.f32.mrf.mxu0
        %v793 = vadd.f32 0.0, %v792
        %794 = vdwg.mxu0
        %v795 = vadd.f32 %v714, %v748
        %v796 = vadd.f32 %v715, %v751
        %v797 = vadd.f32 %v716, %v754
        %v798 = vadd.f32 %v717, %v757
        %v799 = vadd.f32 %v718, %v760
        %v800 = vadd.f32 %v719, %v763
        %v801 = vadd.f32 %v720, %v766
        %v802 = vadd.f32 %v721, %v769
        %v803 = vadd.f32 %v722, %v772
        %v804 = vadd.f32 %v723, %v775
        %v805 = vadd.f32 %v724, %v778
        %v806 = vadd.f32 %v725, %v781
        %v807 = vadd.f32 %v726, %v784
        %v808 = vadd.f32 %v727, %v787
        %v809 = vadd.f32 %v728, %v790
        %v810 = vadd.f32 %v729, %v793
        %811 = vst [vmem:[#allocation5] sm:$0xff] %v795
        %812 = vst [vmem:[#allocation5 + $0x8] sm:$0xff] %v796
        %813 = vst [vmem:[#allocation5 + $0x10] sm:$0xff] %v797
        %814 = vst [vmem:[#allocation5 + $0x18] sm:$0xff] %v798
        %815 = vst [vmem:[#allocation5 + $0x20] sm:$0xff] %v799
        %816 = vst [vmem:[#allocation5 + $0x28] sm:$0xff] %v800
        %817 = vst [vmem:[#allocation5 + $0x30] sm:$0xff] %v801
        %818 = vst [vmem:[#allocation5 + $0x38] sm:$0xff] %v802
        %819 = vst [vmem:[#allocation5 + $0x40] sm:$0xff] %v803
        %820 = vst [vmem:[#allocation5 + $0x48] sm:$0xff] %v804
        %821 = vst [vmem:[#allocation5 + $0x50] sm:$0xff] %v805
        %822 = vst [vmem:[#allocation5 + $0x58] sm:$0xff] %v806
        %823 = vst [vmem:[#allocation5 + $0x60] sm:$0xff] %v807
        %824 = vst [vmem:[#allocation5 + $0x68] sm:$0xff] %v808
        %825 = vst [vmem:[#allocation5 + $0x70] sm:$0xff] %v809
        %826 = vst [vmem:[#allocation5 + $0x78] sm:$0xff] %v810
        %827 = vst [vmem:[#allocation3] sm:$0xff] %v490
        %828 = vst [vmem:[#allocation3 + $0x8] sm:$0xff] %v491
        %829 = vst [vmem:[#allocation3 + $0x10] sm:$0xff] %v492
        %830 = vst [vmem:[#allocation3 + $0x18] sm:$0xff] %v493
        %831 = vst [vmem:[#allocation3 + $0x20] sm:$0xff] %v494
        %832 = vst [vmem:[#allocation3 + $0x28] sm:$0xff] %v495
        %833 = vst [vmem:[#allocation3 + $0x30] sm:$0xff] %v496
        %834 = vst [vmem:[#allocation3 + $0x38] sm:$0xff] %v497
        %835 = vst [vmem:[#allocation3 + $0x40] sm:$0xff] %v498
        %836 = vst [vmem:[#allocation3 + $0x48] sm:$0xff] %v499
        %837 = vst [vmem:[#allocation3 + $0x50] sm:$0xff] %v500
        %838 = vst [vmem:[#allocation3 + $0x58] sm:$0xff] %v501
        %839 = vst [vmem:[#allocation3 + $0x60] sm:$0xff] %v502
        %840 = vst [vmem:[#allocation3 + $0x68] sm:$0xff] %v503
        %841 = vst [vmem:[#allocation3 + $0x70] sm:$0xff] %v504
        %842 = vst [vmem:[#allocation3 + $0x78] sm:$0xff] %v505
        // Predicated region
        $region41: #{tpu_custom_call.1} parent=27 // pred_check
          %p843 = pneg %p238
        $region42: #{tpu_custom_call.1} parent=27 // pred_check_branch
          %845 = sbr.rel (%p843) target = $region44
        $region43: #{tpu_custom_call.1} parent=27 // pred_region
          %v846 = vld [vmem:[#allocation4] sm:$0xff]
          %v847 = vld [vmem:[#allocation4 + $0x8] sm:$0xff]
          %v848 = vld [vmem:[#allocation4 + $0x10] sm:$0xff]
          %v849 = vld [vmem:[#allocation4 + $0x18] sm:$0xff]
          %v850 = vld [vmem:[#allocation4 + $0x20] sm:$0xff]
          %v851 = vld [vmem:[#allocation4 + $0x28] sm:$0xff]
          %v852 = vld [vmem:[#allocation4 + $0x30] sm:$0xff]
          %v853 = vld [vmem:[#allocation4 + $0x38] sm:$0xff]
          %v854 = vld [vmem:[#allocation4 + $0x40] sm:$0xff]
          %v855 = vld [vmem:[#allocation4 + $0x48] sm:$0xff]
          %v856 = vld [vmem:[#allocation4 + $0x50] sm:$0xff]
          %v857 = vld [vmem:[#allocation4 + $0x58] sm:$0xff]
          %v858 = vld [vmem:[#allocation4 + $0x60] sm:$0xff]
          %v859 = vld [vmem:[#allocation4 + $0x68] sm:$0xff]
          %v860 = vld [vmem:[#allocation4 + $0x70] sm:$0xff]
          %v861 = vld [vmem:[#allocation4 + $0x78] sm:$0xff]
          %v862 = vrcp.pop %v846
          %v863 = vrcp.pop %v847
          %v864 = vrcp.pop %v848
          %v865 = vrcp.pop %v849
          %v866 = vrcp.pop %v850
          %v867 = vrcp.pop %v851
          %v868 = vrcp.pop %v852
          %v869 = vrcp.pop %v853
          %v870 = vrcp.pop %v854
          %v871 = vrcp.pop %v855
          %v872 = vrcp.pop %v856
          %v873 = vrcp.pop %v857
          %v874 = vrcp.pop %v858
          %v875 = vrcp.pop %v859
          %v876 = vrcp.pop %v860
          %v877 = vrcp.pop %v861
          %v878 = vmul.f32 %v846, %v862
          %v879 = vmul.f32 %v847, %v863
          %v880 = vmul.f32 %v848, %v864
          %v881 = vmul.f32 %v849, %v865
          %v882 = vmul.f32 %v850, %v866
          %v883 = vmul.f32 %v851, %v867
          %v884 = vmul.f32 %v852, %v868
          %v885 = vmul.f32 %v853, %v869
          %v886 = vmul.f32 %v854, %v870
          %v887 = vmul.f32 %v855, %v871
          %v888 = vmul.f32 %v856, %v872
          %v889 = vmul.f32 %v857, %v873
          %v890 = vmul.f32 %v858, %v874
          %v891 = vmul.f32 %v859, %v875
          %v892 = vmul.f32 %v860, %v876
          %v893 = vmul.f32 %v861, %v877
          %v894 = vsub.f32 2.0, %v878
          %v895 = vsub.f32 2.0, %v879
          %v896 = vsub.f32 2.0, %v880
          %v897 = vsub.f32 2.0, %v881
          %v898 = vsub.f32 2.0, %v882
          %v899 = vsub.f32 2.0, %v883
          %v900 = vsub.f32 2.0, %v884
          %v901 = vsub.f32 2.0, %v885
          %v902 = vsub.f32 2.0, %v886
          %v903 = vsub.f32 2.0, %v887
          %v904 = vsub.f32 2.0, %v888
          %v905 = vsub.f32 2.0, %v889
          %v906 = vsub.f32 2.0, %v890
          %v907 = vsub.f32 2.0, %v891
          %v908 = vsub.f32 2.0, %v892
          %v909 = vsub.f32 2.0, %v893
          %v910 = vmul.f32 %v862, %v894
          %v911 = vmul.f32 %v863, %v895
          %v912 = vmul.f32 %v864, %v896
          %v913 = vmul.f32 %v865, %v897
          %v914 = vmul.f32 %v866, %v898
          %v915 = vmul.f32 %v867, %v899
          %v916 = vmul.f32 %v868, %v900
          %v917 = vmul.f32 %v869, %v901
          %v918 = vmul.f32 %v870, %v902
          %v919 = vmul.f32 %v871, %v903
          %v920 = vmul.f32 %v872, %v904
          %v921 = vmul.f32 %v873, %v905
          %v922 = vmul.f32 %v874, %v906
          %v923 = vmul.f32 %v875, %v907
          %v924 = vmul.f32 %v876, %v908
          %v925 = vmul.f32 %v877, %v909
          %v926 = vld [vmem:[#allocation5] sm:$0xff]
          %v927 = vld [vmem:[#allocation5 + $0x8] sm:$0xff]
          %v928 = vld [vmem:[#allocation5 + $0x10] sm:$0xff]
          %v929 = vld [vmem:[#allocation5 + $0x18] sm:$0xff]
          %v930 = vld [vmem:[#allocation5 + $0x20] sm:$0xff]
          %v931 = vld [vmem:[#allocation5 + $0x28] sm:$0xff]
          %v932 = vld [vmem:[#allocation5 + $0x30] sm:$0xff]
          %v933 = vld [vmem:[#allocation5 + $0x38] sm:$0xff]
          %v934 = vld [vmem:[#allocation5 + $0x40] sm:$0xff]
          %v935 = vld [vmem:[#allocation5 + $0x48] sm:$0xff]
          %v936 = vld [vmem:[#allocation5 + $0x50] sm:$0xff]
          %v937 = vld [vmem:[#allocation5 + $0x58] sm:$0xff]
          %v938 = vld [vmem:[#allocation5 + $0x60] sm:$0xff]
          %v939 = vld [vmem:[#allocation5 + $0x68] sm:$0xff]
          %v940 = vld [vmem:[#allocation5 + $0x70] sm:$0xff]
          %v941 = vld [vmem:[#allocation5 + $0x78] sm:$0xff]
          %v942 = vmul.f32 %v926, %v910
          %v943 = vmul.f32 %v927, %v911
          %v944 = vmul.f32 %v928, %v912
          %v945 = vmul.f32 %v929, %v913
          %v946 = vmul.f32 %v930, %v914
          %v947 = vmul.f32 %v931, %v915
          %v948 = vmul.f32 %v932, %v916
          %v949 = vmul.f32 %v933, %v917
          %v950 = vmul.f32 %v934, %v918
          %v951 = vmul.f32 %v935, %v919
          %v952 = vmul.f32 %v936, %v920
          %v953 = vmul.f32 %v937, %v921
          %v954 = vmul.f32 %v938, %v922
          %v955 = vmul.f32 %v939, %v923
          %v956 = vmul.f32 %v940, %v924
          %v957 = vmul.f32 %v941, %v925
          %958 = vst [vmem:[%s234] sm:$0xff] %v942
          %959 = vst [vmem:[%s234 + $0x8] sm:$0xff] %v943
          %960 = vst [vmem:[%s234 + $0x10] sm:$0xff] %v944
          %961 = vst [vmem:[%s234 + $0x18] sm:$0xff] %v945
          %962 = vst [vmem:[%s234 + $0x20] sm:$0xff] %v946
          %963 = vst [vmem:[%s234 + $0x28] sm:$0xff] %v947
          %964 = vst [vmem:[%s234 + $0x30] sm:$0xff] %v948
          %965 = vst [vmem:[%s234 + $0x38] sm:$0xff] %v949
          %966 = vst [vmem:[%s234 + $0x40] sm:$0xff] %v950
          %967 = vst [vmem:[%s234 + $0x48] sm:$0xff] %v951
          %968 = vst [vmem:[%s234 + $0x50] sm:$0xff] %v952
          %969 = vst [vmem:[%s234 + $0x58] sm:$0xff] %v953
          %970 = vst [vmem:[%s234 + $0x60] sm:$0xff] %v954
          %971 = vst [vmem:[%s234 + $0x68] sm:$0xff] %v955
          %972 = vst [vmem:[%s234 + $0x70] sm:$0xff] %v956
          %973 = vst [vmem:[%s234 + $0x78] sm:$0xff] %v957
        $region44: #{tpu_custom_call.1} parent=27 // pred_fallthru
          _
        %s974 = sand.u32 %s107, 1
        %s975 = scalar_lea.sflag [#allocation8], %s974
        %s976 = sand.u32 %s107, 1
        %s977 = smul.addr %s976, 128
        %s978 = scalar_lea.vmem [#allocation11], %s977
        // Predicated region
        $region45: #{tpu_custom_call.1} parent=27 // pred_check
          %p979 = pneg %p117
        $region46: #{tpu_custom_call.1} parent=27 // pred_check_branch
          %981 = sbr.rel (%p979) target = $region48
        $region47: #{tpu_custom_call.1} parent=27 // pred_region
          %s982 = smul.u32 16, %s28
          %984 = vsyncadd %s975, 0
          %s985 = smul.addr %s27, 16
          %s986 = sadd.s32 %s982, %s985
          %s987 = smul.addr %s986, 8
          %s988 = scalar_lea.hbm %s2, %s987
          %s989 = sshll.u32 %s978, 4
          %s990 = int_to_ptr.vmem [resolvable:$true] %s989
          %s991 = sshll.u32 %s988, 4
          %s992 = int_to_ptr.hbm [resolvable:$true] %s991
          %997 = dma.vmem_to_hbm [thread:$0]  %s990, 2048, %s992, %s975, 128, 128, 8
        $region48: #{tpu_custom_call.1} parent=27 // pred_fallthru
          _
      $region28: #{tpu_custom_call.1} parent=5 // pred_fallthru
        _
      %p998 = scmp.le.s32.totalorder 2, %s17
      // Predicated region
      $region49: #{tpu_custom_call.1} parent=5 // pred_check
        %p999 = pneg %p998
      $region50: #{tpu_custom_call.1} parent=5 // pred_check_branch
        %1001 = sbr.rel (%p999) target = $region52
      $region51: #{tpu_custom_call.1} parent=5 // pred_region
        %s1002 = ssub.s32 %s17, 2
        // Predicated region
        $region53: #{tpu_custom_call.1} parent=51 // pred_check
          %p1003 = pneg %p123
        $region54: #{tpu_custom_call.1} parent=51 // pred_check_branch
          %1005 = sbr.rel (%p1003) target = $region56
        $region55: #{tpu_custom_call.1} parent=51 // pred_region
          %s1006 = sand.u32 %s108, 1
          %s1007 = scalar_lea.sflag [#allocation8], %s1006
          %s1008 = sand.u32 %s108, 1
          %s1009 = smul.addr %s1008, 128
          %s1010 = scalar_lea.vmem [#allocation11], %s1009
          %1012 = dma.done %s1007, 2048
        $region56: #{tpu_custom_call.1} parent=51 // pred_fallthru
          _
      $region52: #{tpu_custom_call.1} parent=5 // pred_fallthru
        _
    $region6: #{tpu_custom_call.1} parent=1 // loop_footer
      %s21 = sadd.s32 1, %s17
    $region7: #{tpu_custom_call.1} parent=1 // loop_footer_branch
      %16 = sbr.rel target = $region3
    $region8: #{tpu_custom_call.1} parent=1 // loop_exit
      _
    %1013 = vsyncpa [#allocation7], 1
    %s1014 = scalar_lea.sflag [#allocation7], 1
    %1015 = vsyncpa %s1014, 1
    %1016 = vsyncpa [#allocation10], 1
    %s1017 = scalar_lea.sflag [#allocation10], 1
    %1018 = vsyncpa %s1017, 1
    %1019 = vsyncpa [#allocation8], 1
    %s1020 = scalar_lea.sflag [#allocation8], 1
    %1021 = vsyncpa %s1020, 1

</llo_original>
